<compile_context>
chip_gen: v7x
topology: tpu7x:2x2x1
jax: 0.10.0
libtpu: 0.0.40
codegen_flags: <defaults>
</compile_context>

<pallas_src>
import functools

import jax
import jax.numpy as jnp
from jax.experimental import pallas as pl
from jax.experimental.pallas import tpu as pltpu


def _make_kernel(N):
    def convt_kernel(x_ref, w_ref, b_ref, o_ref):
        # x_ref: (N, KP, HW)   im2col slab (contraction dim padded to KP=32)
        # w_ref: (COUT, KP)    flipped/flattened/padded weights
        # b_ref: (COUT, 1)     bias
        # o_ref: (N, COUT, HW) lane-dense output
        w = w_ref[...]
        b = b_ref[...]
        for n in range(N):  # N is tiny and static; one MXU dot per image
            xn = x_ref[n]                                    # (KP, HW)
            o_ref[n] = jnp.dot(w, xn,
                               preferred_element_type=jnp.float32) + b
    return convt_kernel


@jax.jit
def conv_transpose2d_pallas(x_nchw, w_pt, b_pt):
    """x_nchw: (N, CIN, H, W); w_pt: (CIN, COUT, K, K) (PyTorch layout); b_pt: (COUT,)."""
    N, CIN, H, W = x_nchw.shape
    CIN_w, COUT, K, _ = w_pt.shape
    assert CIN == CIN_w
    HW = H * W
    pad = K // 2                       # padding=1 for K=3 (stride=1 => same size)
    KC = K * K * CIN                   # 27
    KP = 32                            # contraction dim padded to sublane multiple

    x_f32 = x_nchw.astype(jnp.float32)
    w_f32 = w_pt.astype(jnp.float32)
    b_f32 = b_pt.astype(jnp.float32)

    # ---- wrapper-side im2col (done once by XLA, kernel sees aligned slabs) ----
    x_pad = jnp.pad(x_f32, ((0, 0), (0, 0), (pad, pad), (pad, pad)))
    # taps ordered kh-major, then kw; contraction index = (kh*K + kw)*CIN + ci
    patches = jnp.stack(
        [x_pad[:, :, kh:kh + H, kw:kw + W]
         for kh in range(K) for kw in range(K)],
        axis=1)                                       # (N, K*K, CIN, H, W)
    x_col = patches.reshape(N, KC, HW)
    x_col = jnp.pad(x_col, ((0, 0), (0, KP - KC), (0, 0)))   # (N, KP, HW)

    # ---- effective weight: spatial flip + (Cin,Cout) transpose, flattened ----
    # y[n,co,s] = sum_{kh,kw,ci} x_pad[n,ci,oh+kh,ow+kw] * W_pt[ci,co,K-1-kh,K-1-kw]
    w_flip = w_f32[:, :, ::-1, ::-1]                  # (CIN, COUT, K, K)
    w_eff = jnp.transpose(w_flip, (2, 3, 0, 1))       # (K, K, CIN, COUT)
    w_eff = w_eff.reshape(KC, COUT)                   # row = (kh*K+kw)*CIN + ci
    w_mat = jnp.pad(w_eff, ((0, KP - KC), (0, 0))).T  # (COUT, KP), zero pad rows
    b2d = b_f32.reshape(COUT, 1)

    kernel = _make_kernel(N)
    vmem = pltpu.MemorySpace.VMEM
    y_flat = pl.pallas_call(
        kernel,
        out_shape=jax.ShapeDtypeStruct((N, COUT, HW), jnp.float32),
        in_specs=[
            pl.BlockSpec(memory_space=vmem),
            pl.BlockSpec(memory_space=vmem),
            pl.BlockSpec(memory_space=vmem),
        ],
        out_specs=pl.BlockSpec(memory_space=vmem),
    )(x_col, w_mat, b2d)

    # Pure reshape (no transpose) back to NCHW.
    return y_flat.reshape(N, COUT, H, W)


def conv_transpose2d_ref(x_nchw, w_pt, b_pt):
    """Direct scatter-style reference of PyTorch ConvTranspose2d (stride=1, padding=1)."""
    N, CIN, H, W = x_nchw.shape
    _, COUT, K, _ = w_pt.shape
    pad = K // 2
    y_full = jnp.zeros((N, COUT, H + K - 1, W + K - 1), jnp.float32)
    for kh in range(K):
        for kw in range(K):
            contrib = jnp.einsum('nchw,cd->ndhw', x_nchw, w_pt[:, :, kh, kw])
            y_full = y_full.at[:, :, kh:kh + H, kw:kw + W].add(contrib)
    y = y_full[:, :, pad:pad + H, pad:pad + W]
    return y + b_pt[None, :, None, None]


if __name__ == "__main__":
    N, CIN, COUT, K, H, W = 2, 3, 8, 3, 16, 16

    key = jax.random.PRNGKey(0)
    kx, kw, kb = jax.random.split(key, 3)

    x = jax.random.normal(kx, (N, CIN, H, W), dtype=jnp.float32)
    # PyTorch-style uniform init, deterministic.
    fan = CIN * K * K
    bound = 1.0 / (fan ** 0.5)
    w_pt = jax.random.uniform(kw, (CIN, COUT, K, K), jnp.float32, -bound, bound)
    b_pt = jax.random.uniform(kb, (COUT,), jnp.float32, -bound, bound)

    y = conv_transpose2d_pallas(x, w_pt, b_pt)
    y = jax.block_until_ready(y)

    y_ref = conv_transpose2d_ref(x, w_pt, b_pt)
    assert y.shape == (N, COUT, H, W), y.shape
    assert jnp.allclose(y, y_ref, atol=1e-5, rtol=1e-5), float(jnp.max(jnp.abs(y - y_ref)))

    print("KERNEL_OK")
</pallas_src>

<mosaic_0001>
module attributes {stable_mosaic.version = 11 : i64} {
  func.func @convt_kernel(%arg0: memref<2x32x256xf32, #tpu.memory_space<vmem>>, %arg1: memref<8x32xf32, #tpu.memory_space<vmem>>, %arg2: memref<8x1xf32, #tpu.memory_space<vmem>>, %arg3: memref<2x8x256xf32, #tpu.memory_space<vmem>>) attributes {dimension_semantics = [], scalar_prefetch = 0 : i64, scratch_operands = 0 : i64, tpu.core_type = #tpu.core_type<tc>} {
    %c0 = arith.constant 0 : index
    %c0_0 = arith.constant 0 : index
    %0 = vector.load %arg1[%c0, %c0_0] : memref<8x32xf32, #tpu.memory_space<vmem>>, vector<8x32xf32>
    %c0_1 = arith.constant 0 : index
    %c0_2 = arith.constant 0 : index
    %1 = vector.load %arg2[%c0_1, %c0_2] : memref<8x1xf32, #tpu.memory_space<vmem>>, vector<8x1xf32>
    %c0_3 = arith.constant 0 : index
    %c0_4 = arith.constant 0 : index
    %c0_5 = arith.constant 0 : index
    %2 = vector.load %arg0[%c0_3, %c0_4, %c0_5] : memref<2x32x256xf32, #tpu.memory_space<vmem>>, vector<1x32x256xf32>
    %3 = vector.shape_cast %2 : vector<1x32x256xf32> to vector<32x256xf32>
    %cst = arith.constant dense<0.000000e+00> : vector<8x256xf32>
    %4 = tpu.matmul %0, %3, %cst {dimension_numbers = #tpu.dot_dimension_numbers<[1], [0], [0], [1], [0, 0, 1, 1], [], []>} : vector<8x32xf32>, vector<32x256xf32>, vector<8x256xf32> -> vector<8x256xf32>
    %5 = vector.broadcast %1 : vector<8x1xf32> to vector<8x256xf32>
    %6 = arith.addf %4, %5 : vector<8x256xf32>
    %c0_6 = arith.constant 0 : index
    %c0_7 = arith.constant 0 : index
    %c0_8 = arith.constant 0 : index
    %7 = vector.load %arg3[%c0_6, %c0_7, %c0_8] : memref<2x8x256xf32, #tpu.memory_space<vmem>>, vector<1x8x256xf32>
    %8 = vector.shape_cast %7 : vector<1x8x256xf32> to vector<8x256xf32>
    %9 = vector.shape_cast %6 : vector<8x256xf32> to vector<1x8x256xf32>
    tpu.vector_store %arg3[%c0_6, %c0_7, %c0_8], %9 {strides = array<i32>} : memref<2x8x256xf32, #tpu.memory_space<vmem>>, vector<1x8x256xf32>,
    %c1 = arith.constant 1 : index
    %c0_9 = arith.constant 0 : index
    %c0_10 = arith.constant 0 : index
    %10 = vector.load %arg0[%c1, %c0_9, %c0_10] : memref<2x32x256xf32, #tpu.memory_space<vmem>>, vector<1x32x256xf32>
    %11 = vector.shape_cast %10 : vector<1x32x256xf32> to vector<32x256xf32>
    %cst_11 = arith.constant dense<0.000000e+00> : vector<8x256xf32>
    %12 = tpu.matmul %0, %11, %cst_11 {dimension_numbers = #tpu.dot_dimension_numbers<[1], [0], [0], [1], [0, 0, 1, 1], [], []>} : vector<8x32xf32>, vector<32x256xf32>, vector<8x256xf32> -> vector<8x256xf32>
    %13 = vector.broadcast %1 : vector<8x1xf32> to vector<8x256xf32>
    %14 = arith.addf %12, %13 : vector<8x256xf32>
    %c1_12 = arith.constant 1 : index
    %c0_13 = arith.constant 0 : index
    %c0_14 = arith.constant 0 : index
    %15 = vector.load %arg3[%c1_12, %c0_13, %c0_14] : memref<2x8x256xf32, #tpu.memory_space<vmem>>, vector<1x8x256xf32>
    %16 = vector.shape_cast %15 : vector<1x8x256xf32> to vector<8x256xf32>
    %17 = vector.shape_cast %14 : vector<8x256xf32> to vector<1x8x256xf32>
    tpu.vector_store %arg3[%c1_12, %c0_13, %c0_14], %17 {strides = array<i32>} : memref<2x8x256xf32, #tpu.memory_space<vmem>>, vector<1x8x256xf32>,
    return
  }
}

</mosaic_0001>

<llo_original>
// kernel: conv_transpose2d_pallas.1
$region0: #{conv_transpose2d_pallas.1}
  #allocation0 [shape = 'u32[]', space=smem, size = 0x4, offset = 0x4, fixed_abs, tag = 'smem constant byte address 0x4 - core index']
  #allocation1 [shape = 'u32[144,128]{1,0:T(1,128)}', space=vmem, size = 0x12000, scoped, tag = 'internal scratch']
  %s0 = inlined_call_operand.vmem [shape: f32[2,32,256], index: 0, kind: input, shape index: {}]
  %s1 = inlined_call_operand.vmem [shape: f32[8,32], index: 1, kind: input, shape index: {}]
  %s2 = inlined_call_operand.vmem [shape: f32[8,1], index: 2, kind: input, shape index: {}]
  %s3 = inlined_call_operand.vmem [shape: f32[2,8,256], index: 3, kind: output, shape index: {}]
  %s4 = sld [smem:[#allocation0]]
  $region22: #{conv_transpose2d_pallas.1} parent=0
    _
  %s6 = ssub.s32 1, %s4
  %s7 = scalar_select 0, %s6, %s4
  // Predicated region
  $region2: #{conv_transpose2d_pallas.1} parent=0 // pred_check
    _
  $region3: #{conv_transpose2d_pallas.1} parent=0 // pred_check_branch
    %9 = sbr.rel (0) target = $region5
  $region4: #{conv_transpose2d_pallas.1} parent=0 // pred_region
    _
  $region5: #{conv_transpose2d_pallas.1} parent=0 // pred_fallthru
    _
  // Predicated region
  $region6: #{conv_transpose2d_pallas.1} parent=0 // pred_check
    _
  $region7: #{conv_transpose2d_pallas.1} parent=0 // pred_check_branch
    %11 = sbr.rel (0) target = $region9
  $region8: #{conv_transpose2d_pallas.1} parent=0 // pred_region
    _
  $region9: #{conv_transpose2d_pallas.1} parent=0 // pred_fallthru
    _
  // Predicated region
  $region10: #{conv_transpose2d_pallas.1} parent=0 // pred_check
    _
  $region11: #{conv_transpose2d_pallas.1} parent=0 // pred_check_branch
    %13 = sbr.rel (0) target = $region13
  $region12: #{conv_transpose2d_pallas.1} parent=0 // pred_region
    _
  $region13: #{conv_transpose2d_pallas.1} parent=0 // pred_fallthru
    _
  %v14 = vld [vmem:[%s1] sm:$0xff]
  %v15 = vld [vmem:[%s2] sm:$0xff]
  %v16 = vld [vmem:[%s0] sm:$0xff]
  %v17 = vld [vmem:[%s0 + $0x8] sm:$0xff]
  %v18 = vld [vmem:[%s0 + $0x10] sm:$0xff]
  %v19 = vld [vmem:[%s0 + $0x18] sm:$0xff]
  %v20 = vld [vmem:[%s0 + $0x20] sm:$0xff]
  %v21 = vld [vmem:[%s0 + $0x28] sm:$0xff]
  %v22 = vld [vmem:[%s0 + $0x30] sm:$0xff]
  %v23 = vld [vmem:[%s0 + $0x38] sm:$0xff]
  %25 = vset.pattern.permute.xlu0 0
  %26 = vperm.xlu0 %25, %v15
  %v27 = vpop.permute.xlu0 %26
  %vm29 = vcmask 261120
  %v31 = vsel %vm29, %v14, 0
  %33 = vmatprep.subr.mxu0 %v17
  %34 = vmatpush1.msra.mxu0 %v16
  %35 = vmatprep.subr.mxu0 %v19
  %36 = vmatpush1.msra.mxu0 %v18
  %37 = vmatprep.subr.mxu0 %v21
  %38 = vmatpush1.msra.mxu0 %v20
  %39 = vmatprep.subr.mxu0 %v23
  %40 = vmatpush1.msra.mxu0 %v22
  %41 = vmatprep.subr.mxu0 0.0
  %42 = vmatpush1.msra.mxu0 0.0
  %43 = vmatprep.subr.mxu0 0.0
  %44 = vmatpush1.msra.mxu0 0.0
  %45 = vmatprep.subr.mxu0 0.0
  %46 = vmatpush1.msra.mxu0 0.0
  %47 = vmatprep.subr.mxu0 0.0
  %48 = vmatpush1.msra.mxu0 0.0
  %49 = vmatprep.subr.mxu0 0.0
  %50 = vmatpush1.msra.mxu0 0.0
  %51 = vmatprep.subr.mxu0 0.0
  %52 = vmatpush1.msra.mxu0 0.0
  %53 = vmatprep.subr.mxu0 0.0
  %54 = vmatpush1.msra.mxu0 0.0
  %55 = vmatprep.subr.mxu0 0.0
  %56 = vmatpush1.msra.mxu0 0.0
  %57 = vmatprep.subr.mxu0 0.0
  %58 = vmatpush1.msra.mxu0 0.0
  %59 = vmatprep.subr.mxu0 0.0
  %60 = vmatpush1.msra.mxu0 0.0
  %61 = vmatprep.subr.mxu0 0.0
  %62 = vmatpush1.msra.mxu0 0.0
  %63 = vmatprep.subr.mxu0 0.0
  %64 = vmatpush1.msra.mxu0 0.0
  %65 = vmatprep.subr.mxu0 0.0
  %66 = vmatpush1.msra.mxu0 0.0
  %67 = vmatprep.subr.mxu0 0.0
  %68 = vmatpush1.msra.mxu0 0.0
  %69 = vmatprep.subr.mxu0 0.0
  %70 = vmatpush1.msra.mxu0 0.0
  %71 = vmatprep.subr.mxu0 0.0
  %72 = vmatpush1.msra.mxu0 0.0
  %73 = vmatprep.subr.mxu0 0.0
  %74 = vmatpush1.msra.mxu0 0.0
  %75 = vmatprep.subr.mxu0 0.0
  %76 = vmatpush1.msra.mxu0 0.0
  %77 = vmatprep.subr.mxu0 0.0
  %78 = vmatpush1.msra.mxu0 0.0
  %79 = vmatprep.subr.mxu0 0.0
  %80 = vmatpush1.msra.mxu0 0.0
  %81 = vmatprep.subr.mxu0 0.0
  %82 = vmatpush1.msra.mxu0 0.0
  %83 = vmatprep.subr.mxu0 0.0
  %84 = vmatpush1.msra.mxu0 0.0
  %85 = vmatprep.subr.mxu0 0.0
  %86 = vmatpush1.msra.mxu0 0.0
  %87 = vmatprep.subr.mxu0 0.0
  %88 = vmatpush1.msra.mxu0 0.0
  %89 = vmatprep.subr.mxu0 0.0
  %90 = vmatpush1.msra.mxu0 0.0
  %91 = vmatprep.subr.mxu0 0.0
  %92 = vmatpush1.msra.mxu0 0.0
  %93 = vmatprep.subr.mxu0 0.0
  %94 = vmatpush1.msra.mxu0 0.0
  %95 = vmatprep.subr.mxu0 0.0
  %96 = vmatpush1.msra.mxu0 0.0
  %97 = vmatprep.mubr.f32.mxu0 0.0
  %98 = vmatmul.mubr.f32.gmra.mrb[0].mxu0 %v31
  %v99 = vpop.f32.mrb[0].mxu0
  %v100 = vadd.f32 %v27, %v99
  %v101 = vpop.f32.mrb[0].mxu0
  %v102 = vadd.f32 %v27, %v101
  %103 = vdwg.mxu0
  %104 = vst [vmem:[%s3] sm:$0xff] %v100
  %105 = vst [vmem:[%s3 + $0x8] sm:$0xff] %v102
  %s106 = scalar_lea.vmem %s0, 64
  %v107 = vld [vmem:[%s106] sm:$0xff]
  %v108 = vld [vmem:[%s106 + $0x8] sm:$0xff]
  %v109 = vld [vmem:[%s106 + $0x10] sm:$0xff]
  %v110 = vld [vmem:[%s106 + $0x18] sm:$0xff]
  %v111 = vld [vmem:[%s106 + $0x20] sm:$0xff]
  %v112 = vld [vmem:[%s106 + $0x28] sm:$0xff]
  %v113 = vld [vmem:[%s106 + $0x30] sm:$0xff]
  %v114 = vld [vmem:[%s106 + $0x38] sm:$0xff]
  %115 = vmatprep.subr.mxu0 %v108
  %116 = vmatpush1.msra.mxu0 %v107
  %117 = vmatprep.subr.mxu0 %v110
  %118 = vmatpush1.msra.mxu0 %v109
  %119 = vmatprep.subr.mxu0 %v112
  %120 = vmatpush1.msra.mxu0 %v111
  %121 = vmatprep.subr.mxu0 %v114
  %122 = vmatpush1.msra.mxu0 %v113
  %123 = vmatprep.subr.mxu0 0.0
  %124 = vmatpush1.msra.mxu0 0.0
  %125 = vmatprep.subr.mxu0 0.0
  %126 = vmatpush1.msra.mxu0 0.0
  %127 = vmatprep.subr.mxu0 0.0
  %128 = vmatpush1.msra.mxu0 0.0
  %129 = vmatprep.subr.mxu0 0.0
  %130 = vmatpush1.msra.mxu0 0.0
  %131 = vmatprep.subr.mxu0 0.0
  %132 = vmatpush1.msra.mxu0 0.0
  %133 = vmatprep.subr.mxu0 0.0
  %134 = vmatpush1.msra.mxu0 0.0
  %135 = vmatprep.subr.mxu0 0.0
  %136 = vmatpush1.msra.mxu0 0.0
  %137 = vmatprep.subr.mxu0 0.0
  %138 = vmatpush1.msra.mxu0 0.0
  %139 = vmatprep.subr.mxu0 0.0
  %140 = vmatpush1.msra.mxu0 0.0
  %141 = vmatprep.subr.mxu0 0.0
  %142 = vmatpush1.msra.mxu0 0.0
  %143 = vmatprep.subr.mxu0 0.0
  %144 = vmatpush1.msra.mxu0 0.0
  %145 = vmatprep.subr.mxu0 0.0
  %146 = vmatpush1.msra.mxu0 0.0
  %147 = vmatprep.subr.mxu0 0.0
  %148 = vmatpush1.msra.mxu0 0.0
  %149 = vmatprep.subr.mxu0 0.0
  %150 = vmatpush1.msra.mxu0 0.0
  %151 = vmatprep.subr.mxu0 0.0
  %152 = vmatpush1.msra.mxu0 0.0
  %153 = vmatprep.subr.mxu0 0.0
  %154 = vmatpush1.msra.mxu0 0.0
  %155 = vmatprep.subr.mxu0 0.0
  %156 = vmatpush1.msra.mxu0 0.0
  %157 = vmatprep.subr.mxu0 0.0
  %158 = vmatpush1.msra.mxu0 0.0
  %159 = vmatprep.subr.mxu0 0.0
  %160 = vmatpush1.msra.mxu0 0.0
  %161 = vmatprep.subr.mxu0 0.0
  %162 = vmatpush1.msra.mxu0 0.0
  %163 = vmatprep.subr.mxu0 0.0
  %164 = vmatpush1.msra.mxu0 0.0
  %165 = vmatprep.subr.mxu0 0.0
  %166 = vmatpush1.msra.mxu0 0.0
  %167 = vmatprep.subr.mxu0 0.0
  %168 = vmatpush1.msra.mxu0 0.0
  %169 = vmatprep.subr.mxu0 0.0
  %170 = vmatpush1.msra.mxu0 0.0
  %171 = vmatprep.subr.mxu0 0.0
  %172 = vmatpush1.msra.mxu0 0.0
  %173 = vmatprep.subr.mxu0 0.0
  %174 = vmatpush1.msra.mxu0 0.0
  %175 = vmatprep.subr.mxu0 0.0
  %176 = vmatpush1.msra.mxu0 0.0
  %177 = vmatprep.subr.mxu0 0.0
  %178 = vmatpush1.msra.mxu0 0.0
  %179 = vmatprep.mubr.f32.mxu0 0.0
  %180 = vmatmul.mubr.f32.gmra.mrb[0].mxu0 %v31
  %v181 = vpop.f32.mrb[0].mxu0
  %v182 = vadd.f32 %v27, %v181
  %v183 = vpop.f32.mrb[0].mxu0
  %v184 = vadd.f32 %v27, %v183
  %185 = vdwg.mxu0
  %s186 = scalar_lea.vmem %s3, 16
  %187 = vst [vmem:[%s186] sm:$0xff] %v182
  %188 = vst [vmem:[%s186 + $0x8] sm:$0xff] %v184
  // Predicated region
  $region14: #{conv_transpose2d_pallas.1} parent=0 // pred_check
    _
  $region15: #{conv_transpose2d_pallas.1} parent=0 // pred_check_branch
    %190 = sbr.rel (0) target = $region17
  $region16: #{conv_transpose2d_pallas.1} parent=0 // pred_region
    _
  $region17: #{conv_transpose2d_pallas.1} parent=0 // pred_fallthru
    _
  // Predicated region
  $region18: #{conv_transpose2d_pallas.1} parent=0 // pred_check
    _
  $region19: #{conv_transpose2d_pallas.1} parent=0 // pred_check_branch
    %192 = sbr.rel (0) target = $region21
  $region20: #{conv_transpose2d_pallas.1} parent=0 // pred_region
    _
  $region21: #{conv_transpose2d_pallas.1} parent=0 // pred_fallthru
    _

</llo_original>
